<compile_context>
chip_gen: v7x
topology: tpu7x:2x2x1
jax: 0.10.0
libtpu: 0.0.40
codegen_flags: <defaults>
</compile_context>

<pallas_src>
import functools

import jax
import jax.numpy as jnp
from jax.experimental import pallas as pl
from jax.experimental.pallas import tpu as pltpu


def _ce2d_kernel(x_ref, t_ref, out_ref, acc_ref, *, hw, tile):
    p = pl.program_id(1)

    @pl.when(p == 0)
    def _():
        acc_ref[...] = jnp.zeros_like(acc_ref)

    x = x_ref[0].astype(jnp.float32)   # (C, TILE) logits, upcast in-kernel
    tgt = t_ref[0]                     # (1, TILE) int32 target class indices
    C = x.shape[0]

    # one-hot of the target class along the (sublane) class axis
    cls_iota = jax.lax.broadcasted_iota(jnp.int32, (C, tile), 0)
    onehot = cls_iota == tgt                                           # (C, TILE)

    # log-softmax over classes, gathered at the target class
    m = jnp.max(x, axis=0, keepdims=True)                              # (1, TILE)
    lse = m + jnp.log(jnp.sum(jnp.exp(x - m), axis=0, keepdims=True))  # (1, TILE)
    picked = jnp.sum(jnp.where(onehot, x, 0.0), axis=0, keepdims=True) # (1, TILE)

    # mask lanes past the end of the image (last partial tile)
    lane = jax.lax.broadcasted_iota(jnp.int32, (1, tile), 1)
    valid = (p * tile + lane) < hw
    acc_ref[...] += jnp.where(valid, lse - picked, 0.0)   # -log p(target) per pixel

    @pl.when(p == pl.num_programs(1) - 1)
    def _():
        # single cross-lane reduce per image -> per-image partial sum
        out_ref[...] = jnp.sum(acc_ref[...]).reshape(1, 1, 1)


def _round_up(x, m):
    return (x + m - 1) // m * m


def cross_entropy_loss_2d(inputs, targets, *, max_tile=4096):
    """inputs, targets: (N, C, H, W). Scalar mean CE over N*H*W pixels.

    Equivalent to:
        nn.NLLLoss(weight=None, size_average=True)(
            nn.LogSoftmax(dim=1)(inputs), targets.argmax(dim=1))
    """
    N, C, H, W = inputs.shape
    HW = H * W

    # native dtype, no wrapper-side f32 cast of the logits
    x = inputs.reshape(N, C, HW)
    # module semantics: target class = argmax over the channel axis
    # (first-max tie-breaking matches torch.argmax)
    tgt = jnp.argmax(targets, axis=1).astype(jnp.int32).reshape(N, 1, HW)

    tile = min(_round_up(max_tile, 128), _round_up(HW, 128))
    num_p = pl.cdiv(HW, tile)

    kernel = functools.partial(_ce2d_kernel, hw=HW, tile=tile)
    partials = pl.pallas_call(
        kernel,
        out_shape=jax.ShapeDtypeStruct((N, 1, 1), jnp.float32),
        grid_spec=pltpu.PrefetchScalarGridSpec(
            num_scalar_prefetch=0,
            grid=(N, num_p),
            in_specs=[
                pl.BlockSpec((1, C, tile), lambda n, p: (n, 0, p)),
                pl.BlockSpec((1, 1, tile), lambda n, p: (n, 0, p)),
            ],
            out_specs=pl.BlockSpec((1, 1, 1), lambda n, p: (n, 0, 0)),
            scratch_shapes=[pltpu.VMEM((1, tile), jnp.float32)],
        ),
        compiler_params=pltpu.CompilerParams(
            dimension_semantics=("parallel", "arbitrary"),
            vmem_limit_bytes=32 * 1024 * 1024,
        ),
    )(x, tgt)

    # final mean over all pixels done in the wrapper (tiny: N partial sums)
    return jnp.sum(partials) / jnp.float32(N * HW)


def _reference(inputs, targets):
    # pure-JAX reference of the PyTorch forward
    logp = jax.nn.log_softmax(inputs.astype(jnp.float32), axis=1)
    tgt = jnp.argmax(targets, axis=1)                               # (N, H, W)
    picked = jnp.take_along_axis(logp, tgt[:, None], axis=1)[:, 0]  # (N, H, W)
    return -jnp.mean(picked)


if __name__ == "__main__":
    key = jax.random.PRNGKey(0)
    k1, k2 = jax.random.split(key)

    # primary shape from the module spec
    N, C, H, W = 2, 4, 16, 16
    inputs = jax.random.normal(k1, (N, C, H, W), dtype=jnp.float32)
    cls = jax.random.randint(k2, (N, H, W), 0, C)
    targets = jax.nn.one_hot(cls, C, axis=1).astype(jnp.float32)  # (N, C, H, W)

    loss = jax.block_until_ready(cross_entropy_loss_2d(inputs, targets))
    ref = jax.block_until_ready(_reference(inputs, targets))
    assert jnp.allclose(loss, ref, rtol=1e-5, atol=1e-5), (loss, ref)

    # second shape exercises pixel-axis tiling + last-tile lane masking
    # (HW = 225, tile = 128 -> 2 pixel tiles, last one partially masked)
    k3, k4 = jax.random.split(k2)
    N2, C2, H2, W2 = 2, 5, 15, 15
    inputs2 = jax.random.normal(k3, (N2, C2, H2, W2), dtype=jnp.float32)
    cls2 = jax.random.randint(k4, (N2, H2, W2), 0, C2)
    targets2 = jax.nn.one_hot(cls2, C2, axis=1).astype(jnp.float32)

    loss2 = jax.block_until_ready(
        cross_entropy_loss_2d(inputs2, targets2, max_tile=128))
    ref2 = jax.block_until_ready(_reference(inputs2, targets2))
    assert jnp.allclose(loss2, ref2, rtol=1e-5, atol=1e-5), (loss2, ref2)

    print("KERNEL_OK")
</pallas_src>

<mosaic_0001>
module attributes {stable_mosaic.version = 11 : i64} {
  func.func @_ce2d_kernel(%arg0: i32, %arg1: i32, %arg2: memref<1x4x256xf32, #tpu.memory_space<vmem>>, %arg3: memref<1x1x256xi32, #tpu.memory_space<vmem>>, %arg4: memref<1x1x1xf32, #tpu.memory_space<vmem>>, %arg5: memref<1x256xf32, #tpu.memory_space<vmem>>) attributes {dimension_semantics = [#tpu.dimension_semantics<parallel>, #tpu.dimension_semantics<arbitrary>], iteration_bounds = array<i64: 2, 1>, scalar_prefetch = 0 : i64, scratch_operands = 1 : i64, tpu.core_type = #tpu.core_type<tc>, window_params = [{transform_indices = @transform_0, window_bounds = array<i64: 1, 4, 256>}, {transform_indices = @transform_1, window_bounds = array<i64: 1, 1, 256>}, {transform_indices = @transform_2, window_bounds = array<i64: 1, 1, 1>}]} {
    %c0_i32 = arith.constant 0 : i32
    %0 = arith.cmpi eq, %arg1, %c0_i32 : i32
    %1 = arith.extui %0 : i1 to i32
    %c0_i32_0 = arith.constant 0 : i32
    %2 = arith.cmpi ne, %1, %c0_i32_0 : i32
    scf.if %2 {
      %cst_17 = arith.constant 0.000000e+00 : f32
      %38 = vector.broadcast %cst_17 : f32 to vector<1x256xf32>
      %c0_18 = arith.constant 0 : index
      %c0_19 = arith.constant 0 : index
      %39 = vector.load %arg5[%c0_18, %c0_19] : memref<1x256xf32, #tpu.memory_space<vmem>>, vector<1x256xf32>
      tpu.vector_store %arg5[%c0_18, %c0_19], %38 {strides = array<i32>} : memref<1x256xf32, #tpu.memory_space<vmem>>, vector<1x256xf32>,
    } else {
    }
    %c0 = arith.constant 0 : index
    %c0_1 = arith.constant 0 : index
    %c0_2 = arith.constant 0 : index
    %3 = vector.load %arg2[%c0, %c0_1, %c0_2] : memref<1x4x256xf32, #tpu.memory_space<vmem>>, vector<1x4x256xf32>
    %4 = vector.shape_cast %3 : vector<1x4x256xf32> to vector<4x256xf32>
    %c0_3 = arith.constant 0 : index
    %c0_4 = arith.constant 0 : index
    %c0_5 = arith.constant 0 : index
    %5 = vector.load %arg3[%c0_3, %c0_4, %c0_5] : memref<1x1x256xi32, #tpu.memory_space<vmem>>, vector<1x1x256xi32>
    %6 = vector.shape_cast %5 : vector<1x1x256xi32> to vector<1x256xi32>
    %7 = tpu.iota {dimensions = array<i32: 0>} : vector<4x256xi32>
    %8 = vector.broadcast %6 : vector<1x256xi32> to vector<4x256xi32>
    %9 = arith.cmpi eq, %7, %8 : vector<4x256xi32>
    %cst = arith.constant dense<0xFF800000> : vector<256xf32>
    %10 = vector.multi_reduction <maximumf>, %4, %cst [0] : vector<4x256xf32> to vector<256xf32>
    %11 = vector.shape_cast %10 : vector<256xf32> to vector<1x256xf32>
    %12 = vector.broadcast %11 : vector<1x256xf32> to vector<4x256xf32>
    %13 = arith.subf %4, %12 : vector<4x256xf32>
    %14 = math.exp %13 : vector<4x256xf32>
    %cst_6 = arith.constant dense<0.000000e+00> : vector<256xf32>
    %15 = vector.multi_reduction <add>, %14, %cst_6 [0] : vector<4x256xf32> to vector<256xf32>
    %16 = vector.shape_cast %15 : vector<256xf32> to vector<1x256xf32>
    %17 = math.log %16 : vector<1x256xf32>
    %18 = arith.addf %11, %17 : vector<1x256xf32>
    %cst_7 = arith.constant 0.000000e+00 : f32
    %19 = vector.broadcast %cst_7 : f32 to vector<4x256xf32>
    %20 = arith.select %9, %4, %19 : vector<4x256xi1>, vector<4x256xf32>
    %cst_8 = arith.constant dense<0.000000e+00> : vector<256xf32>
    %21 = vector.multi_reduction <add>, %20, %cst_8 [0] : vector<4x256xf32> to vector<256xf32>
    %22 = vector.shape_cast %21 : vector<256xf32> to vector<1x256xf32>
    %23 = tpu.iota {dimensions = array<i32: 1>} : vector<1x256xi32>
    %c256_i32 = arith.constant 256 : i32
    %24 = arith.muli %arg1, %c256_i32 : i32
    %25 = vector.broadcast %24 : i32 to vector<1x256xi32>
    %26 = arith.addi %25, %23 : vector<1x256xi32>
    %c256_i32_9 = arith.constant 256 : i32
    %27 = vector.broadcast %c256_i32_9 : i32 to vector<1x256xi32>
    %28 = arith.cmpi slt, %26, %27 : vector<1x256xi32>
    %c0_10 = arith.constant 0 : index
    %c0_11 = arith.constant 0 : index
    %29 = vector.load %arg5[%c0_10, %c0_11] : memref<1x256xf32, #tpu.memory_space<vmem>>, vector<1x256xf32>
    %30 = arith.subf %18, %22 : vector<1x256xf32>
    %cst_12 = arith.constant 0.000000e+00 : f32
    %31 = vector.broadcast %cst_12 : f32 to vector<1x256xf32>
    %32 = arith.select %28, %30, %31 : vector<1x256xi1>, vector<1x256xf32>
    %33 = arith.addf %29, %32 : vector<1x256xf32>
    %c0_13 = arith.constant 0 : index
    %c0_14 = arith.constant 0 : index
    %34 = vector.load %arg5[%c0_13, %c0_14] : memref<1x256xf32, #tpu.memory_space<vmem>>, vector<1x256xf32>
    tpu.vector_store %arg5[%c0_13, %c0_14], %33 {strides = array<i32>} : memref<1x256xf32, #tpu.memory_space<vmem>>, vector<1x256xf32>,
    %c0_i32_15 = arith.constant 0 : i32
    %35 = arith.cmpi eq, %arg1, %c0_i32_15 : i32
    %36 = arith.extui %35 : i1 to i32
    %c0_i32_16 = arith.constant 0 : i32
    %37 = arith.cmpi ne, %36, %c0_i32_16 : i32
    scf.if %37 {
      %c0_17 = arith.constant 0 : index
      %c0_18 = arith.constant 0 : index
      %38 = vector.load %arg5[%c0_17, %c0_18] : memref<1x256xf32, #tpu.memory_space<vmem>>, vector<1x256xf32>
      %39 = vector.shape_cast %38 : vector<1x256xf32> to vector<1x1x256xf32>
      %cst_19 = arith.constant dense<0.000000e+00> : vector<1xf32>
      %40 = vector.multi_reduction <add>, %39, %cst_19 [1, 2] : vector<1x1x256xf32> to vector<1xf32>
      %41 = vector.shape_cast %40 : vector<1xf32> to vector<1x1x1xf32>
      %42 = vector.extract %41[0, 0, 0] : f32 from vector<1x1x1xf32>
      %43 = vector.broadcast %42 : f32 to vector<1x1x1xf32>
      %c0_20 = arith.constant 0 : index
      %c0_21 = arith.constant 0 : index
      %c0_22 = arith.constant 0 : index
      %44 = vector.load %arg4[%c0_20, %c0_21, %c0_22] : memref<1x1x1xf32, #tpu.memory_space<vmem>>, vector<1x1x1xf32>
      tpu.vector_store %arg4[%c0_20, %c0_21, %c0_22], %43 {strides = array<i32>} : memref<1x1x1xf32, #tpu.memory_space<vmem>>, vector<1x1x1xf32>,
    } else {
    }
    return
  }
  func.func @transform_0(%arg0: i32, %arg1: i32) -> (i32, i32, i32) {
    %c0_i32 = arith.constant 0 : i32
    %c0_i32_0 = arith.constant 0 : i32
    return %arg0, %c0_i32, %arg1 : i32, i32, i32
  }
  func.func @transform_1(%arg0: i32, %arg1: i32) -> (i32, i32, i32) {
    %c0_i32 = arith.constant 0 : i32
    %c0_i32_0 = arith.constant 0 : i32
    return %arg0, %c0_i32, %arg1 : i32, i32, i32
  }
  func.func @transform_2(%arg0: i32, %arg1: i32) -> (i32, i32, i32) {
    %c0_i32 = arith.constant 0 : i32
    %c0_i32_0 = arith.constant 0 : i32
    %c0_i32_1 = arith.constant 0 : i32
    return %arg0, %c0_i32, %c0_i32_0 : i32, i32, i32
  }
}

</mosaic_0001>

<llo_original>
// kernel: tpu_custom_call.1
$region0: #{tpu_custom_call.1}
  #allocation0 [shape = 'u32[]', space=smem, size = 0x4, offset = 0x4, fixed_abs, tag = 'smem constant byte address 0x4 - core index']
  #allocation1 [shape = 'u32[144,128]{1,0:T(1,128)}', space=vmem, size = 0x12000, scoped, tag = 'internal scratch']
  #allocation2 [shape = 'f32[1,256]{1,0:T(1,128)}', space=vmem, size = 0x400, scoped, tag = 'scratch operand']
  %s0 = inlined_call_operand.hbm [shape: f32[2,4,256], index: 0, kind: input, shape index: {}]
  %s1 = inlined_call_operand.hbm [shape: s32[2,1,256], index: 1, kind: input, shape index: {}]
  %s2 = inlined_call_operand.vmem [shape: f32[2,1,1], index: 2, kind: output, shape index: {}]
  %s3 = sld [smem:[#allocation0]]
  $region57: #{tpu_custom_call.1} parent=0
    _
  %s5 = ssub.s32 1, %s3
  %s6 = scalar_select 0, %s5, %s3
  $region1: #{tpu_custom_call.1} parent=0
    #allocation3 [shape = 'u8[8192]{0}', space=vmem, size = 0x2000, scoped, tag = 'input window, operand 0']
    #allocation4 [shape = 's32[2]{0}', space=sflag, size = 0x8, scoped, tag = 'scoped memory for tpu_custom_call.1']
    #allocation5 [shape = 'u8[2048]{0}', space=vmem, size = 0x800, scoped, tag = 'input window, operand 1']
    #allocation6 [shape = 's32[2]{0}', space=sflag, size = 0x8, scoped, tag = 'scoped memory for tpu_custom_call.1']
    %7 = vsyncpa [#allocation4], 0
    %s8 = scalar_lea.sflag [#allocation4], 1
    %9 = vsyncpa %s8, 0
    %10 = vsyncpa [#allocation6], 0
    %s11 = scalar_lea.sflag [#allocation6], 1
    %12 = vsyncpa %s11, 0
    loop: start=0, step=1, limit=4
    $region2: #{tpu_custom_call.1} parent=1 // loop_pre_header
      _
    $region3: #{tpu_custom_call.1} parent=1 // loop_header
      %s14 = sphi 0, %s18
      %p15 = scmp.ge.s32.totalorder %s14, 4
      %s21 = sphi 0, %s33
      %s22 = sphi 0, %s29
      %s23 = sphi 0, %s21
      %s24 = sphi 0, %s22
      %s25 = sphi 0, %s23
      %s26 = sphi 0, %s24
      %s38 = sphi 0, %s40
      %s41 = sphi 0, %s38
      %s42 = sphi 0, %s41
      %s58 = sphi 0, %s42
      %s66 = sphi 0, %s68
      %s69 = sphi 0, %s66
      %s70 = sphi 0, %s69
      %s86 = sphi 0, %s70
      %s92 = sphi 0, %s94
      %s95 = sphi 0, %s92
      %s96 = sphi 0, %s95
      %s112 = sphi 0, %s96
    $region4: #{tpu_custom_call.1} parent=1 // loop_header_branch
      %17 = sbr.rel (%p15) target = $region8
    $region5: #{tpu_custom_call.1} parent=1 // loop_body
      %s19 = ssub.s32 %s14, 1
      %s20 = ssub.s32 %s14, 2
      %s27 = sadd.s32 1, %s22
      %p28 = scmp.ge.s32.totalorder %s27, 1
      %s29 = scalar_select %p28, 0, %s27
      %s30 = sadd.s32 1, %s21
      %s31 = scalar_select %p28, %s30, %s21
      %p32 = scmp.ge.s32.totalorder %s31, 2
      %s33 = scalar_select %p32, 0, %s31
      %s34 = ssub.s32 %s21, %s33
      %s35 = ssub.s32 %s22, %s29
      %s36 = sor.u32 %s34, %s35
      %p37 = scmp.eq.s32.totalorder %s36, 0
      %s39 = sadd.s32 %s38, 1
      %s40 = scalar_select %p37, %s38, %s39
      %p43 = pneg %p37
      %p44 = scmp.eq.s32.totalorder %s14, 1
      %p45 = por %p43, %p44
      %p46 = scmp.ne.s32.totalorder %s38, %s41
      %p47 = scmp.eq.s32.totalorder %s14, 0
      %p48 = por %p46, %p47
      %p49 = scmp.ne.s32.totalorder %s38, %s41
      %p50 = scmp.eq.s32.totalorder %s19, 1
      %p51 = por %p49, %p50
      %p52 = scmp.ne.s32.totalorder %s41, %s42
      %p53 = scmp.eq.s32.totalorder %s19, 0
      %p54 = por %p52, %p53
      %p55 = scmp.ne.s32.totalorder %s41, %s42
      %p56 = scmp.eq.s32.totalorder %s20, 1
      %p57 = por %p55, %p56
      %p59 = scmp.ne.s32.totalorder %s42, %s58
      %p60 = scmp.eq.s32.totalorder %s20, 0
      %p61 = por %p59, %p60
      %s62 = ssub.s32 %s21, %s33
      %s63 = ssub.s32 %s22, %s29
      %s64 = sor.u32 %s62, %s63
      %p65 = scmp.eq.s32.totalorder %s64, 0
      %s67 = sadd.s32 %s66, 1
      %s68 = scalar_select %p65, %s66, %s67
      %p71 = pneg %p65
      %p72 = scmp.eq.s32.totalorder %s14, 1
      %p73 = por %p71, %p72
      %p74 = scmp.ne.s32.totalorder %s66, %s69
      %p75 = scmp.eq.s32.totalorder %s14, 0
      %p76 = por %p74, %p75
      %p77 = scmp.ne.s32.totalorder %s66, %s69
      %p78 = scmp.eq.s32.totalorder %s19, 1
      %p79 = por %p77, %p78
      %p80 = scmp.ne.s32.totalorder %s69, %s70
      %p81 = scmp.eq.s32.totalorder %s19, 0
      %p82 = por %p80, %p81
      %p83 = scmp.ne.s32.totalorder %s69, %s70
      %p84 = scmp.eq.s32.totalorder %s20, 1
      %p85 = por %p83, %p84
      %p87 = scmp.ne.s32.totalorder %s70, %s86
      %p88 = scmp.eq.s32.totalorder %s20, 0
      %p89 = por %p87, %p88
      %s90 = ssub.s32 %s21, %s33
      %p91 = scmp.eq.s32.totalorder %s90, 0
      %s93 = sadd.s32 %s92, 1
      %s94 = scalar_select %p91, %s92, %s93
      %p97 = pneg %p91
      %p98 = scmp.eq.s32.totalorder %s14, 1
      %p99 = por %p97, %p98
      %p100 = scmp.ne.s32.totalorder %s92, %s95
      %p101 = scmp.eq.s32.totalorder %s14, 0
      %p102 = por %p100, %p101
      %p103 = scmp.ne.s32.totalorder %s92, %s95
      %p104 = scmp.eq.s32.totalorder %s19, 1
      %p105 = por %p103, %p104
      %p106 = scmp.ne.s32.totalorder %s95, %s96
      %p107 = scmp.eq.s32.totalorder %s19, 0
      %p108 = por %p106, %p107
      %p109 = scmp.ne.s32.totalorder %s95, %s96
      %p110 = scmp.eq.s32.totalorder %s20, 1
      %p111 = por %p109, %p110
      %p113 = scmp.ne.s32.totalorder %s96, %s112
      %p114 = scmp.eq.s32.totalorder %s20, 0
      %p115 = por %p113, %p114
      %p116 = scmp.le.s32.totalorder 1, %s14
      %p117 = scmp.lt.s32.totalorder %s14, 3
      %p118 = pnand %p116, %p117
      %p119 = pneg %p118
      // Predicated region
      $region9: #{tpu_custom_call.1} parent=5 // pred_check
        _
      $region10: #{tpu_custom_call.1} parent=5 // pred_check_branch
        %121 = sbr.rel (%p118) target = $region12
      $region11: #{tpu_custom_call.1} parent=5 // pred_region
        %s122 = ssub.s32 %s14, 1
      $region12: #{tpu_custom_call.1} parent=5 // pred_fallthru
        _
      %p123 = scmp.lt.s32.totalorder %s14, 2
      // Predicated region
      $region13: #{tpu_custom_call.1} parent=5 // pred_check
        %p124 = pneg %p123
      $region14: #{tpu_custom_call.1} parent=5 // pred_check_branch
        %126 = sbr.rel (%p124) target = $region16
      $region15: #{tpu_custom_call.1} parent=5 // pred_region
        // Predicated region
        $region17: #{tpu_custom_call.1} parent=15 // pred_check
          %p127 = pneg %p48
        $region18: #{tpu_custom_call.1} parent=15 // pred_check_branch
          %129 = sbr.rel (%p127) target = $region20
        $region19: #{tpu_custom_call.1} parent=15 // pred_region
          %s130 = sand.u32 %s38, 1
          %s131 = scalar_lea.sflag [#allocation4], %s130
          %s132 = sand.u32 %s38, 1
          %s133 = smul.addr %s132, 8
          %s134 = scalar_lea.vmem [#allocation3], %s133
          %s135 = smul.u32 2, %s22
          %s137 = ssub.s32 128, 128
          %138 = vsyncadd %s131, %s137
          %s139 = smul.addr %s21, 2
          %s140 = sadd.s32 %s135, %s139
          %s141 = smul.addr %s140, 64
          %s142 = scalar_lea.hbm %s0, %s141
          %s144 = sshll.u32 %s134, 4
          %s145 = int_to_ptr.vmem [resolvable:$true] %s144
          %147 = dma.hbm_to_vmem [thread:$0]  %s142, 128, %s145, %s131
        $region20: #{tpu_custom_call.1} parent=15 // pred_fallthru
          _
        // Predicated region
        $region21: #{tpu_custom_call.1} parent=15 // pred_check
          %p148 = pneg %p76
        $region22: #{tpu_custom_call.1} parent=15 // pred_check_branch
          %150 = sbr.rel (%p148) target = $region24
        $region23: #{tpu_custom_call.1} parent=15 // pred_region
          %s151 = sand.u32 %s66, 1
          %s152 = scalar_lea.sflag [#allocation6], %s151
          %s153 = sand.u32 %s66, 1
          %s154 = smul.addr %s153, 2
          %s155 = scalar_lea.vmem [#allocation5], %s154
          %s156 = smul.u32 2, %s22
          %s158 = ssub.s32 32, 32
          %159 = vsyncadd %s152, %s158
          %s160 = smul.addr %s21, 2
          %s161 = sadd.s32 %s156, %s160
          %s162 = smul.addr %s161, 16
          %s163 = scalar_lea.hbm %s1, %s162
          %s165 = sshll.u32 %s155, 4
          %s166 = int_to_ptr.vmem [resolvable:$true] %s165
          %168 = dma.hbm_to_vmem [thread:$0]  %s163, 32, %s166, %s152
        $region24: #{tpu_custom_call.1} parent=15 // pred_fallthru
          _
      $region16: #{tpu_custom_call.1} parent=5 // pred_fallthru
        _
      %p169 = scmp.le.s32.totalorder 1, %s14
      %p170 = scmp.lt.s32.totalorder %s14, 3
      %p171 = pnand %p169, %p170
      %p172 = pneg %p171
      // Predicated region
      $region25: #{tpu_custom_call.1} parent=5 // pred_check
        _
      $region26: #{tpu_custom_call.1} parent=5 // pred_check_branch
        %174 = sbr.rel (%p171) target = $region28
      $region27: #{tpu_custom_call.1} parent=5 // pred_region
        %s175 = ssub.s32 %s14, 1
        %s176 = sand.u32 %s41, 1
        %s177 = scalar_lea.sflag [#allocation4], %s176
        %s178 = sand.u32 %s41, 1
        %s179 = smul.addr %s178, 8
        %s180 = scalar_lea.vmem [#allocation3], %s179
        // Predicated region
        $region29: #{tpu_custom_call.1} parent=27 // pred_check
          %p181 = pneg %p54
        $region30: #{tpu_custom_call.1} parent=27 // pred_check_branch
          %183 = sbr.rel (%p181) target = $region32
        $region31: #{tpu_custom_call.1} parent=27 // pred_region
          %184 = dma.done %s177, 128
        $region32: #{tpu_custom_call.1} parent=27 // pred_fallthru
          _
        %s185 = sand.u32 %s69, 1
        %s186 = scalar_lea.sflag [#allocation6], %s185
        %s187 = sand.u32 %s69, 1
        %s188 = smul.addr %s187, 2
        %s189 = scalar_lea.vmem [#allocation5], %s188
        // Predicated region
        $region33: #{tpu_custom_call.1} parent=27 // pred_check
          %p190 = pneg %p82
        $region34: #{tpu_custom_call.1} parent=27 // pred_check_branch
          %192 = sbr.rel (%p190) target = $region36
        $region35: #{tpu_custom_call.1} parent=27 // pred_region
          %193 = dma.done %s186, 32
        $region36: #{tpu_custom_call.1} parent=27 // pred_fallthru
          _
        %s194 = sand.u32 %s41, 1
        %s195 = scalar_lea.sflag [#allocation4], %s194
        %s196 = sand.u32 %s41, 1
        %s197 = smul.addr %s196, 8
        %s198 = scalar_lea.vmem [#allocation3], %s197
        %p199 = pneg %p54
        %p200 = pneg %p51
        %s201 = sand.u32 %s69, 1
        %s202 = scalar_lea.sflag [#allocation6], %s201
        %s203 = sand.u32 %s69, 1
        %s204 = smul.addr %s203, 2
        %s205 = scalar_lea.vmem [#allocation5], %s204
        %p206 = pneg %p82
        %p207 = pneg %p79
        %p208 = pneg %p108
        %p209 = pneg %p105
        %p210 = scmp.lt.s32.totalorder %s23, 1
        %s211 = scalar_select %p210, %s23, 1
        %s212 = scalar_lea.vmem %s2, %s211
        %s213 = smul.u32 2, %s24
        %s214 = smul.u32 2, %s24
        %p215 = scmp.lt.s32.totalorder %s23, 1
        %s216 = scalar_select %p215, %s23, 1
        %s217 = scalar_lea.vmem %s2, %s216
        %p218 = scmp.eq.s32.totalorder %s24, 0
        // Predicated region
        $region37: #{tpu_custom_call.1} parent=27 // pred_check
          %p219 = pneg %p218
        $region38: #{tpu_custom_call.1} parent=27 // pred_check_branch
          %221 = sbr.rel (%p219) target = $region40
        $region39: #{tpu_custom_call.1} parent=27 // pred_region
          %v222 = vlaneseq
          %vm223 = vcmp.ge.s32.totalorder %v222, 0
          %vm224 = vcmp.lt.s32.totalorder %v222, 256
          %vm225 = vmand %vm223, %vm224
          %226 = vst.msk [vmem:[#allocation2] sm:$0x3] %vm225, 0.0
        $region40: #{tpu_custom_call.1} parent=27 // pred_fallthru
          _
        %v227 = vld [vmem:[%s180] sm:$0xff]
        %v228 = vld [vmem:[%s189] sm:$0x3]
        %v229 = vlaneseq
        %v230 = vshrl.u32 %v229, 7
        %v231 = vlaneseq
        %v232 = vshrl.u32 %v231, 7
        %v233 = vsub.s32 0, %v232
        %v234 = vrot.slane %v228, %v233
        %v235 = vlaneseq
        %v236 = vshrl.u32 %v235, 7
        %v237 = vsub.s32 1, %v236
        %v238 = vrot.slane %v228, %v237
        %vm239 = vcmp.eq.s32.totalorder %v230, %v234
        %vm240 = vcmp.eq.s32.totalorder %v230, %v238
        %v242 = vcombine.high %v227, %v227
        %vm244 = vcmask 1043456
        %v245 = vsel %vm244, %v227, -inf
        %v246 = vrot.slane %v245, 4
        %v247 = vmax.f32 %v245, %v246
        %v248 = vrot.slane %v247, 2
        %v249 = vmax.f32 %v247, %v248
        %v250 = vrot.slane %v249, 1
        %v251 = vmax.f32 %v249, %v250
        %v252 = vsel %vm244, %v242, -inf
        %v253 = vrot.slane %v252, 4
        %v254 = vmax.f32 %v252, %v253
        %v255 = vrot.slane %v254, 2
        %v256 = vmax.f32 %v254, %v255
        %v257 = vrot.slane %v256, 1
        %v258 = vmax.f32 %v256, %v257
        %v261 = vcombine.low %v251, %v258
        %v263 = vsub.f32 %v227, %v261
        %v264 = vmul.f32 %v263, 1.442695
        %v265 = vpow.pop %v264
        %v267 = vcombine.high %v265, %v265
        %v269 = vsel %vm244, %v265, 0.0
        %v270 = vrot.slane %v269, 4
        %v271 = vadd.f32 %v269, %v270
        %v272 = vrot.slane %v271, 2
        %v273 = vadd.f32 %v271, %v272
        %v274 = vrot.slane %v273, 1
        %v275 = vadd.f32 %v273, %v274
        %v276 = vsel %vm244, %v267, 0.0
        %v277 = vrot.slane %v276, 4
        %v278 = vadd.f32 %v276, %v277
        %v279 = vrot.slane %v278, 2
        %v280 = vadd.f32 %v278, %v279
        %v281 = vrot.slane %v280, 1
        %v282 = vadd.f32 %v280, %v281
        %v283 = vlog2.pop %v275
        %v284 = vmul.f32 %v283, 0.6931472
        %v285 = vlog2.pop %v282
        %v286 = vmul.f32 %v285, 0.6931472
        %v287 = vadd.f32 %v251, %v284
        %v288 = vadd.f32 %v258, %v286
        %v289 = vsel %vm239, %v227, 0.0
        %v290 = vsel %vm240, %v242, 0.0
        %v291 = vsel %vm244, %v289, 0.0
        %v292 = vrot.slane %v291, 4
        %v293 = vadd.f32 %v291, %v292
        %v294 = vrot.slane %v293, 2
        %v295 = vadd.f32 %v293, %v294
        %v296 = vrot.slane %v295, 1
        %v297 = vadd.f32 %v295, %v296
        %v298 = vsel %vm244, %v290, 0.0
        %v299 = vrot.slane %v298, 4
        %v300 = vadd.f32 %v298, %v299
        %v301 = vrot.slane %v300, 2
        %v302 = vadd.f32 %v300, %v301
        %v303 = vrot.slane %v302, 1
        %v304 = vadd.f32 %v302, %v303
        %v305 = vlaneseq
        %v306 = vand.u32 %v305, 127
        %v307 = vadd.s32 %v306, 128
        %s308 = smul.u32 %s24, 256
        %v309 = vstv %s308
        %v310 = vadd.s32 %v309, %v306
        %v311 = vadd.s32 %v309, %v307
        %vm312 = vcmp.lt.s32.totalorder %v310, 256
        %vm313 = vcmp.lt.s32.totalorder %v311, 256
        %v314 = vld [vmem:[#allocation2] sm:$0x3]
        %v315 = vsub.f32 %v287, %v297
        %v316 = vsub.f32 %v288, %v304
        %v317 = vsel %vm312, %v315, 0.0
        %v318 = vsel %vm313, %v316, 0.0
        %v321 = vcombine.low %v317, %v318
        %v323 = vunpack.c.l.s4 1966171168
        %v324 = vunpack.c.0.s8 %v323
        %v325 = vlaneseq
        %v326 = vshrl.u32 %v325, 7
        %v327 = vsub.s32 %v324, %v326
        %v328 = vrot.slane %v321, %v327
        %v330 = vunpack.c.l.s4 1966171168
        %v331 = vunpack.c.0.s8 %v330
        %v332 = vlaneseq
        %v333 = vshrl.u32 %v332, 7
        %v334 = vsub.s32 %v331, %v333
        %v335 = vrot.slane %v328, %v334
        %v337 = vadd.f32 %v314, %v335
        %v338 = vlaneseq
        %vm339 = vcmp.ge.s32.totalorder %v338, 0
        %vm340 = vcmp.lt.s32.totalorder %v338, 256
        %vm341 = vmand %vm339, %vm340
        %342 = vst.msk [vmem:[#allocation2] sm:$0x3] %vm341, %v337
        // Predicated region
        $region41: #{tpu_custom_call.1} parent=27 // pred_check
          %p343 = pneg %p218
        $region42: #{tpu_custom_call.1} parent=27 // pred_check_branch
          %345 = sbr.rel (%p343) target = $region44
        $region43: #{tpu_custom_call.1} parent=27 // pred_region
          %v346 = vld [vmem:[#allocation2] sm:$0x3]
          %v348 = vlaneseq
          %v349 = vshrl.u32 %v348, 7
          %v350 = vsub.s32 0, %v349
          %v351 = vrot.slane %v346, %v350
          %v352 = vlaneseq
          %v353 = vshrl.u32 %v352, 7
          %v354 = vsub.s32 1, %v353
          %v355 = vrot.slane %v346, %v354
          %vm358 = vcmask 1040384
          %v359 = vsel %vm358, %v351, 0.0
          %v360 = vsel %vm358, %v355, 0.0
          %v361 = vadd.f32 %v359, %v360
          %362 = vadd.xlane.f32.xlu0 %v361
          %v363 = vpop.xlane.xlu0 %362
          %v364 = vrot.slane %v363, 4
          %v365 = vadd.f32 %v363, %v364
          %v366 = vrot.slane %v365, 2
          %v367 = vadd.f32 %v365, %v366
          %v368 = vrot.slane %v367, 1
          %v369 = vadd.f32 %v367, %v368
          %s370 = vtos %v369
          %v371 = vstv %s370
          %vm372 = vcmask 0
          %373 = vst.msk [vmem:[%s217] sm:$0x1] %vm372, %v371
        $region44: #{tpu_custom_call.1} parent=27 // pred_fallthru
          _
        %p374 = scmp.lt.s32.totalorder %s23, 1
        %s375 = scalar_select %p374, %s23, 1
        %s376 = scalar_lea.vmem %s2, %s375
        // Predicated region
        $region45: #{tpu_custom_call.1} parent=27 // pred_check
          %p377 = pneg %p105
        $region46: #{tpu_custom_call.1} parent=27 // pred_check_branch
          %379 = sbr.rel (%p377) target = $region48
        $region47: #{tpu_custom_call.1} parent=27 // pred_region
          _
        $region48: #{tpu_custom_call.1} parent=27 // pred_fallthru
          _
      $region28: #{tpu_custom_call.1} parent=5 // pred_fallthru
        _
      %p380 = scmp.le.s32.totalorder 2, %s14
      // Predicated region
      $region49: #{tpu_custom_call.1} parent=5 // pred_check
        %p381 = pneg %p380
      $region50: #{tpu_custom_call.1} parent=5 // pred_check_branch
        %383 = sbr.rel (%p381) target = $region52
      $region51: #{tpu_custom_call.1} parent=5 // pred_region
        %s384 = ssub.s32 %s14, 2
        // Predicated region
        $region53: #{tpu_custom_call.1} parent=51 // pred_check
          %p385 = pneg %p111
        $region54: #{tpu_custom_call.1} parent=51 // pred_check_branch
          %387 = sbr.rel (%p385) target = $region56
        $region55: #{tpu_custom_call.1} parent=51 // pred_region
          %p388 = scmp.lt.s32.totalorder %s25, 1
          %s389 = scalar_select %p388, %s25, 1
          %s390 = scalar_lea.vmem %s2, %s389
        $region56: #{tpu_custom_call.1} parent=51 // pred_fallthru
          _
      $region52: #{tpu_custom_call.1} parent=5 // pred_fallthru
        _
    $region6: #{tpu_custom_call.1} parent=1 // loop_footer
      %s18 = sadd.s32 1, %s14
    $region7: #{tpu_custom_call.1} parent=1 // loop_footer_branch
      %13 = sbr.rel target = $region3
    $region8: #{tpu_custom_call.1} parent=1 // loop_exit
      _
    %391 = vsyncpa [#allocation4], 1
    %s392 = scalar_lea.sflag [#allocation4], 1
    %393 = vsyncpa %s392, 1
    %394 = vsyncpa [#allocation6], 1
    %s395 = scalar_lea.sflag [#allocation6], 1
    %396 = vsyncpa %s395, 1

</llo_original>
